<compile_context>
chip_gen: v5e
topology: v5e:2x2
jax: 0.10.0
libtpu: 0.0.40
codegen_flags: <defaults>
</compile_context>

<pallas_src>
import functools
import numpy as np

import jax
import jax.numpy as jnp
from jax import lax
from jax.experimental import pallas as pl
from jax.experimental.pallas import tpu as pltpu


def _round_up(x: int, m: int) -> int:
    return ((x + m - 1) // m) * m


def _cdiv(a: int, b: int) -> int:
    return (a + b - 1) // b


def _int_pow(x, n: int):
    """x**n for small non-negative integer n via exponentiation-by-squaring
    (pure VPU multiplies; avoids pow -> exp(n*log(x)) on the single EUP slot)."""
    if n == 0:
        return jnp.ones_like(x)
    acc = None
    base = x
    while n > 0:
        if n & 1:
            acc = base if acc is None else acc * base
        n >>= 1
        if n:
            base = base * base
    return acc


def _pow(x, p):
    if isinstance(p, int) and 0 <= p <= 64:
        return _int_pow(x, p)
    # TODO(synk): non-integer exponents fall back to the transcendental pow path.
    return jnp.power(x, float(p))


def _focal_rowsum_kernel(pred_ref, tgt_ref, out_ref, *, alpha, beta, eps):
    """One grid step: rows = one (ROW_TILE) slab of (b,c) pairs, cols = one
    HW tile.  Accumulates packed per-row sums into the resident output block.

    pred_ref / tgt_ref : (ROW_TILE, HW_TILE) in native dtype (cast to f32 here)
    out_ref            : (ROW_TILE, 128) f32; col0=pos_loss, col1=neg_loss,
                         col2=num_pos, remaining lanes zero.
    """
    j = pl.program_id(1)  # HW (reduction) axis — last grid dim, "arbitrary"

    pred = pred_ref[...].astype(jnp.float32)
    tgt = tgt_ref[...].astype(jnp.float32)

    pos_mask = tgt == 1.0
    pos_f = pos_mask.astype(jnp.float32)
    neg_f = (tgt < 1.0).astype(jnp.float32)

    pred_c = jnp.clip(pred, eps, 1.0 - eps)
    one_m_pred = 1.0 - pred_c

    # Mutually exclusive branches -> single log per element.
    #   pos: log(p)   * (1-p)^alpha * 1
    #   neg: log(1-p) * p^alpha     * (1-t)^beta
    log_arg = jnp.where(pos_mask, pred_c, one_m_pred)
    pow_base = jnp.where(pos_mask, one_m_pred, pred_c)
    # maximum(., 0) is a no-op for valid targets (t <= 1) and makes padded
    # entries (t = 2) exactly neutral regardless of the pow path.
    neg_w = _pow(jnp.maximum(1.0 - tgt, 0.0), beta)
    w = jnp.where(pos_mask, 1.0, neg_w)

    term = jnp.log(log_arg) * _pow(pow_base, alpha) * w
    pos_loss = term * pos_f
    neg_loss = term * neg_f

    pos_sum = jnp.sum(pos_loss, axis=-1, keepdims=True)   # (ROW_TILE, 1)
    neg_sum = jnp.sum(neg_loss, axis=-1, keepdims=True)
    npos_sum = jnp.sum(pos_f, axis=-1, keepdims=True)

    # Pack the three per-row sums into a lane-dense (ROW_TILE, 128) slab.
    col = lax.broadcasted_iota(jnp.int32, out_ref.shape, 1)
    packed = jnp.where(col == 0, pos_sum,
             jnp.where(col == 1, neg_sum,
             jnp.where(col == 2, npos_sum, 0.0)))

    @pl.when(j == 0)
    def _():
        out_ref[...] = jnp.zeros_like(out_ref)

    out_ref[...] += packed


class FocalLoss:
    """JAX/Pallas re-implementation of animaloc.train.losses.focal.FocalLoss."""

    def __init__(self, alpha: int = 2, beta: int = 4, reduction: str = "sum",
                 weights=None, density_weight=None, normalize: bool = False,
                 eps: float = 1e-6):
        assert reduction in ("mean", "sum")
        assert density_weight in (None, "linear", "squared", "cubic")

        def _static_exp(p):
            try:
                if float(p) == float(int(p)):
                    return int(p)
            except (TypeError, ValueError):
                pass
            return float(p)

        self.alpha = _static_exp(alpha)
        self.beta = _static_exp(beta)
        self.reduction = reduction
        self.weights = None if weights is None else jnp.asarray(weights, jnp.float32)
        self.density_weight = density_weight
        self.normalize = normalize
        self.eps = float(eps)

    # ------------------------------------------------------------------ #
    def _row_sums(self, pred2d, tgt2d):
        """pred2d/tgt2d: [BC, HW] (native dtype) -> [BC, 3] f32 sums
        (pos_loss, neg_loss, num_pos) per row."""
        bc, hw = pred2d.shape
        itemsize = jnp.dtype(pred2d.dtype).itemsize

        # ---- HW (reduction) tiling: lane-dim multiple of 128 ---------- #
        MAX_HW_TILE = 16384                      # 64 KiB/row at f32
        hw128 = _round_up(hw, 128)
        n_hw_tiles = max(1, _cdiv(hw128, MAX_HW_TILE))
        hw_tile = _round_up(_cdiv(hw128, n_hw_tiles), 128)
        hw_pad = hw_tile * n_hw_tiles

        # ---- row tiling from a ~4 MiB-per-block VMEM budget ----------- #
        # 2 inputs x 2 pipeline buffers x 4 MiB = 16 MiB, safe under the
        # 32 MiB scoped VMEM limit on v5e/v6e/v7x.
        bc8 = _round_up(bc, 8)
        max_block_elems = (4 * 1024 * 1024) // itemsize
        row_tile = max(8, (max_block_elems // hw_tile) // 8 * 8)
        row_tile = min(row_tile, 512, bc8)
        # Keep >= 2 steps on the "parallel" row axis when possible so v7x's
        # two TensorCores both get work.
        if bc8 >= 16 and _round_up(bc8, row_tile) // row_tile < 2:
            row_tile = _round_up(_cdiv(bc8, 2), 8)
        bc_pad = _round_up(bc8, row_tile)

        # ---- neutral padding ------------------------------------------ #
        # tgt = 2.0 -> pos_inds = 0 and neg_inds = 0: contributes exactly 0
        # to every sum.  pred = 0.5 keeps the log argument well-conditioned.
        pad_r = bc_pad - bc
        pad_c = hw_pad - hw
        if pad_r or pad_c:
            pred2d = jnp.pad(pred2d, ((0, pad_r), (0, pad_c)), constant_values=0.5)
            tgt2d = jnp.pad(tgt2d, ((0, pad_r), (0, pad_c)), constant_values=2.0)

        grid = (bc_pad // row_tile, hw_pad // hw_tile)

        kernel = functools.partial(
            _focal_rowsum_kernel, alpha=self.alpha, beta=self.beta, eps=self.eps)

        in_spec = pl.BlockSpec((row_tile, hw_tile), lambda i, j: (i, j))
        out_spec = pl.BlockSpec((row_tile, 128), lambda i, j: (i, 0))

        packed = pl.pallas_call(
            kernel,
            out_shape=jax.ShapeDtypeStruct((bc_pad, 128), jnp.float32),
            grid_spec=pltpu.PrefetchScalarGridSpec(
                num_scalar_prefetch=0,
                grid=grid,
                in_specs=[in_spec, in_spec],
                out_specs=out_spec,
            ),
            compiler_params=pltpu.CompilerParams(
                dimension_semantics=("parallel", "arbitrary"),
                vmem_limit_bytes=32 * 1024 * 1024),
        )(pred2d, tgt2d)

        return packed[:bc, :3]

    # ------------------------------------------------------------------ #
    def __call__(self, output, target):
        """output, target: [B, C, H, W] arrays -> scalar loss."""
        B, C, H, W = output.shape
        if self.weights is not None:
            assert self.weights.shape[0] == C

        bc = B * C
        hw = H * W
        # Keep native dtype (e.g. bf16 heatmaps) — the kernel casts to f32.
        pred2d = output.reshape(bc, hw)
        tgt2d = target.reshape(bc, hw)

        sums = self._row_sums(pred2d, tgt2d)          # [bc, 3] f32
        pos_s = sums[:, 0].reshape(B, C)
        neg_s = sums[:, 1].reshape(B, C)
        npos = sums[:, 2].reshape(B, C)

        # Per-(B, C) combination (cheap glue, matches the PyTorch loop).
        if self.density_weight == "linear":
            density = npos
        elif self.density_weight == "squared":
            density = npos ** 2
        elif self.density_weight == "cubic":
            density = npos ** 3
        else:
            density = jnp.ones_like(npos)

        has_pos = npos > 0
        loss_pos = density * (-(pos_s + neg_s))
        if self.normalize:
            loss_pos = loss_pos / jnp.maximum(npos, 1.0)
        loss = jnp.where(has_pos, loss_pos, -neg_s)

        if self.weights is not None:
            loss = self.weights * loss

        if self.reduction == "mean":
            return jnp.mean(loss)
        return jnp.sum(loss)


# ---------------------------------------------------------------------- #
def _reference_focal_loss(output, target, alpha=2, beta=4, eps=1e-6):
    """Pure-numpy reference mirroring the PyTorch code (default settings)."""
    output = np.asarray(output, np.float32)
    target = np.asarray(target, np.float32)
    B, C, _, _ = target.shape
    pos_inds = (target == 1.0).astype(np.float32)
    neg_inds = (target < 1.0).astype(np.float32)
    neg_weights = (1.0 - target) ** beta
    out_c = np.clip(output, eps, 1.0 - eps)
    pos_loss = np.log(out_c) * (1.0 - out_c) ** alpha * pos_inds
    neg_loss = np.log(1.0 - out_c) * out_c ** alpha * neg_weights * neg_inds
    num_pos = pos_inds.sum(axis=(2, 3))
    pos_loss = pos_loss.sum(axis=(2, 3))
    neg_loss = neg_loss.sum(axis=(2, 3))
    loss = np.zeros((B, C), np.float32)
    for b in range(B):
        for c in range(C):
            if num_pos[b, c] == 0:
                loss[b, c] = -neg_loss[b, c]
            else:
                loss[b, c] = -(pos_loss[b, c] + neg_loss[b, c])
    return loss.sum()


if __name__ == "__main__":
    key = jax.random.PRNGKey(0)
    k1, k2, k3 = jax.random.split(key, 3)

    B, C, H, W = 2, 4, 16, 16
    # Predicted heatmap in (0, 1).
    output = jax.random.uniform(k1, (B, C, H, W), jnp.float32,
                                minval=0.01, maxval=0.99)
    # Target heatmap: gaussian-like values in [0, 1) with some exact 1.0 peaks.
    base = jax.random.uniform(k2, (B, C, H, W), jnp.float32) * 0.9
    peaks = jax.random.uniform(k3, (B, C, H, W), jnp.float32) > 0.97
    target = jnp.where(peaks, 1.0, base)

    loss_mod = FocalLoss(alpha=2, beta=4, reduction="sum")
    loss = loss_mod(output, target)
    loss = jax.block_until_ready(loss)

    ref = _reference_focal_loss(np.array(output), np.array(target))
    assert np.allclose(np.array(loss), ref, rtol=1e-4, atol=1e-3), (loss, ref)

    print("KERNEL_OK")
</pallas_src>

<mosaic_0001>
module attributes {stable_mosaic.version = 11 : i64} {
  func.func @_focal_rowsum_kernel(%arg0: i32, %arg1: i32, %arg2: memref<8x256xf32, #tpu.memory_space<vmem>>, %arg3: memref<8x256xf32, #tpu.memory_space<vmem>>, %arg4: memref<8x128xf32, #tpu.memory_space<vmem>>) attributes {dimension_semantics = [#tpu.dimension_semantics<parallel>, #tpu.dimension_semantics<arbitrary>], iteration_bounds = array<i64: 1, 1>, scalar_prefetch = 0 : i64, scratch_operands = 0 : i64, tpu.core_type = #tpu.core_type<tc>, window_params = [{transform_indices = @transform_0, window_bounds = array<i64: 8, 256>}, {transform_indices = @transform_1, window_bounds = array<i64: 8, 256>}, {transform_indices = @transform_2, window_bounds = array<i64: 8, 128>}]} {
    %c0 = arith.constant 0 : index
    %c0_0 = arith.constant 0 : index
    %0 = vector.load %arg2[%c0, %c0_0] : memref<8x256xf32, #tpu.memory_space<vmem>>, vector<8x256xf32>
    %c0_1 = arith.constant 0 : index
    %c0_2 = arith.constant 0 : index
    %1 = vector.load %arg3[%c0_1, %c0_2] : memref<8x256xf32, #tpu.memory_space<vmem>>, vector<8x256xf32>
    %cst = arith.constant 1.000000e+00 : f32
    %2 = vector.broadcast %cst : f32 to vector<8x256xf32>
    %3 = arith.cmpf oeq, %1, %2 : vector<8x256xf32>
    %4 = arith.extui %3 : vector<8x256xi1> to vector<8x256xi32>
    %5 = arith.sitofp %4 : vector<8x256xi32> to vector<8x256xf32>
    %cst_3 = arith.constant 1.000000e+00 : f32
    %6 = vector.broadcast %cst_3 : f32 to vector<8x256xf32>
    %7 = arith.cmpf olt, %1, %6 : vector<8x256xf32>
    %8 = arith.extui %7 : vector<8x256xi1> to vector<8x256xi32>
    %9 = arith.sitofp %8 : vector<8x256xi32> to vector<8x256xf32>
    %cst_4 = arith.constant 9.99999997E-7 : f32
    %cst_5 = arith.constant 0.999998986 : f32
    %10 = vector.broadcast %cst_4 : f32 to vector<8x256xf32>
    %11 = arith.maximumf %10, %0 : vector<8x256xf32>
    %12 = vector.broadcast %cst_5 : f32 to vector<8x256xf32>
    %13 = arith.minimumf %12, %11 : vector<8x256xf32>
    %cst_6 = arith.constant 1.000000e+00 : f32
    %14 = vector.broadcast %cst_6 : f32 to vector<8x256xf32>
    %15 = arith.subf %14, %13 : vector<8x256xf32>
    %16 = arith.select %3, %13, %15 : vector<8x256xi1>, vector<8x256xf32>
    %17 = arith.select %3, %15, %13 : vector<8x256xi1>, vector<8x256xf32>
    %cst_7 = arith.constant 1.000000e+00 : f32
    %18 = vector.broadcast %cst_7 : f32 to vector<8x256xf32>
    %19 = arith.subf %18, %1 : vector<8x256xf32>
    %cst_8 = arith.constant 0.000000e+00 : f32
    %20 = vector.broadcast %cst_8 : f32 to vector<8x256xf32>
    %21 = arith.maximumf %19, %20 : vector<8x256xf32>
    %22 = arith.mulf %21, %21 : vector<8x256xf32>
    %23 = arith.mulf %22, %22 : vector<8x256xf32>
    %cst_9 = arith.constant 1.000000e+00 : f32
    %24 = vector.broadcast %cst_9 : f32 to vector<8x256xf32>
    %25 = arith.select %3, %24, %23 : vector<8x256xi1>, vector<8x256xf32>
    %26 = math.log %16 : vector<8x256xf32>
    %27 = arith.mulf %17, %17 : vector<8x256xf32>
    %28 = arith.mulf %26, %27 : vector<8x256xf32>
    %29 = arith.mulf %28, %25 : vector<8x256xf32>
    %30 = arith.mulf %29, %5 : vector<8x256xf32>
    %31 = arith.mulf %29, %9 : vector<8x256xf32>
    %cst_10 = arith.constant dense<0.000000e+00> : vector<8xf32>
    %32 = vector.multi_reduction <add>, %30, %cst_10 [1] : vector<8x256xf32> to vector<8xf32>
    %33 = vector.shape_cast %32 : vector<8xf32> to vector<8x1xf32>
    %cst_11 = arith.constant dense<0.000000e+00> : vector<8xf32>
    %34 = vector.multi_reduction <add>, %31, %cst_11 [1] : vector<8x256xf32> to vector<8xf32>
    %35 = vector.shape_cast %34 : vector<8xf32> to vector<8x1xf32>
    %cst_12 = arith.constant dense<0.000000e+00> : vector<8xf32>
    %36 = vector.multi_reduction <add>, %5, %cst_12 [1] : vector<8x256xf32> to vector<8xf32>
    %37 = vector.shape_cast %36 : vector<8xf32> to vector<8x1xf32>
    %38 = tpu.iota {dimensions = array<i32: 1>} : vector<8x128xi32>
    %c0_i32 = arith.constant 0 : i32
    %39 = vector.broadcast %c0_i32 : i32 to vector<8x128xi32>
    %40 = arith.cmpi eq, %38, %39 : vector<8x128xi32>
    %c1_i32 = arith.constant 1 : i32
    %41 = vector.broadcast %c1_i32 : i32 to vector<8x128xi32>
    %42 = arith.cmpi eq, %38, %41 : vector<8x128xi32>
    %c2_i32 = arith.constant 2 : i32
    %43 = vector.broadcast %c2_i32 : i32 to vector<8x128xi32>
    %44 = arith.cmpi eq, %38, %43 : vector<8x128xi32>
    %cst_13 = arith.constant 0.000000e+00 : f32
    %45 = vector.shape_cast %37 : vector<8x1xf32> to vector<8x1xf32>
    %46 = vector.broadcast %45 : vector<8x1xf32> to vector<8x128xf32>
    %47 = vector.broadcast %cst_13 : f32 to vector<8x128xf32>
    %48 = arith.select %44, %46, %47 : vector<8x128xi1>, vector<8x128xf32>
    %49 = vector.shape_cast %35 : vector<8x1xf32> to vector<8x1xf32>
    %50 = vector.broadcast %49 : vector<8x1xf32> to vector<8x128xf32>
    %51 = arith.select %42, %50, %48 : vector<8x128xi1>, vector<8x128xf32>
    %52 = vector.shape_cast %33 : vector<8x1xf32> to vector<8x1xf32>
    %53 = vector.broadcast %52 : vector<8x1xf32> to vector<8x128xf32>
    %54 = arith.select %40, %53, %51 : vector<8x128xi1>, vector<8x128xf32>
    %c0_i32_14 = arith.constant 0 : i32
    %55 = arith.cmpi eq, %arg1, %c0_i32_14 : i32
    %56 = arith.extui %55 : i1 to i32
    %c0_i32_15 = arith.constant 0 : i32
    %57 = arith.cmpi ne, %56, %c0_i32_15 : i32
    scf.if %57 {
      %cst_20 = arith.constant 0.000000e+00 : f32
      %61 = vector.broadcast %cst_20 : f32 to vector<8x128xf32>
      %c0_21 = arith.constant 0 : index
      %c0_22 = arith.constant 0 : index
      %62 = vector.load %arg4[%c0_21, %c0_22] : memref<8x128xf32, #tpu.memory_space<vmem>>, vector<8x128xf32>
      tpu.vector_store %arg4[%c0_21, %c0_22], %61 {strides = array<i32>} : memref<8x128xf32, #tpu.memory_space<vmem>>, vector<8x128xf32>,
    } else {
    }
    %c0_16 = arith.constant 0 : index
    %c0_17 = arith.constant 0 : index
    %58 = vector.load %arg4[%c0_16, %c0_17] : memref<8x128xf32, #tpu.memory_space<vmem>>, vector<8x128xf32>
    %59 = arith.addf %58, %54 : vector<8x128xf32>
    %c0_18 = arith.constant 0 : index
    %c0_19 = arith.constant 0 : index
    %60 = vector.load %arg4[%c0_18, %c0_19] : memref<8x128xf32, #tpu.memory_space<vmem>>, vector<8x128xf32>
    tpu.vector_store %arg4[%c0_18, %c0_19], %59 {strides = array<i32>} : memref<8x128xf32, #tpu.memory_space<vmem>>, vector<8x128xf32>,
    return
  }
  func.func @transform_0(%arg0: i32, %arg1: i32) -> (i32, i32) {
    %c0_i32 = arith.constant 0 : i32
    return %arg0, %arg1 : i32, i32
  }
  func.func @transform_1(%arg0: i32, %arg1: i32) -> (i32, i32) {
    %c0_i32 = arith.constant 0 : i32
    return %arg0, %arg1 : i32, i32
  }
  func.func @transform_2(%arg0: i32, %arg1: i32) -> (i32, i32) {
    %c0_i32 = arith.constant 0 : i32
    %c0_i32_0 = arith.constant 0 : i32
    return %arg0, %c0_i32 : i32, i32
  }
}

</mosaic_0001>

<llo_original>
// kernel: tpu_custom_call.1
$region0: #{tpu_custom_call.1}
  #allocation0 [shape = 'u32[]', space=smem, size = 0x4, offset = 0x4, fixed_abs, tag = 'smem constant byte address 0x4 - core index']
  #allocation1 [shape = 'u32[72,128]{1,0:T(1,128)}', space=vmem, size = 0x9000, scoped, tag = 'internal scratch']
  %s0 = inlined_call_operand.hbm [shape: f32[8,256], index: 0, kind: input, shape index: {}]
  %s1 = inlined_call_operand.hbm [shape: f32[8,256], index: 1, kind: input, shape index: {}]
  %s2 = inlined_call_operand.hbm [shape: f32[8,128], index: 2, kind: output, shape index: {}]
  %s3 = sld [smem:[#allocation0]]
  $region30: #{tpu_custom_call.1} parent=0
    _
  %s5 = ssub.s32 1, %s3
  %s6 = scalar_select 0, %s5, %s3
  $region1: #{tpu_custom_call.1} parent=0
    #allocation2 [shape = 'u8[8192]{0}', space=vmem, size = 0x2000, scoped, tag = 'input window, operand 0, single buffered']
    #allocation3 [shape = 's32[1]{0}', space=sflag, size = 0x4, scoped, tag = 'scoped memory for tpu_custom_call.1']
    #allocation4 [shape = 's32[1]{0}', space=sflag, size = 0x4, scoped, tag = 'scoped memory for tpu_custom_call.1']
    #allocation5 [shape = 'u8[8192]{0}', space=vmem, size = 0x2000, scoped, tag = 'input window, operand 1, single buffered']
    #allocation6 [shape = 's32[1]{0}', space=sflag, size = 0x4, scoped, tag = 'scoped memory for tpu_custom_call.1']
    #allocation7 [shape = 'u8[4096]{0}', space=vmem, size = 0x1000, scoped, tag = 'output window, operand 0, single buffered']
    %7 = vsyncpa [#allocation3], 0
    %8 = vsyncpa [#allocation6], 0
    %9 = vsyncpa [#allocation4], 0
    // Predicated region
    $region2: #{tpu_custom_call.1} parent=1 // pred_check
      _
    $region3: #{tpu_custom_call.1} parent=1 // pred_check_branch
      %11 = sbr.rel (0) target = $region5
    $region4: #{tpu_custom_call.1} parent=1 // pred_region
      %13 = vsyncadd [#allocation3], 0
      %s15 = sshll.u32 %s0, 4
      %s16 = int_to_ptr.hbm [resolvable:$true] %s15
      %s17 = sshll.u32 [#allocation2], 4
      %s18 = int_to_ptr.vmem [resolvable:$true] %s17
      %20 = dma.hbm_to_vmem [thread:$0]  %s16, 256, %s18, [#allocation3]
    $region5: #{tpu_custom_call.1} parent=1 // pred_fallthru
      _
    // Predicated region
    $region6: #{tpu_custom_call.1} parent=1 // pred_check
      _
    $region7: #{tpu_custom_call.1} parent=1 // pred_check_branch
      %22 = sbr.rel (0) target = $region9
    $region8: #{tpu_custom_call.1} parent=1 // pred_region
      %24 = vsyncadd [#allocation6], 0
      %s26 = sshll.u32 %s1, 4
      %s27 = int_to_ptr.hbm [resolvable:$true] %s26
      %s28 = sshll.u32 [#allocation5], 4
      %s29 = int_to_ptr.vmem [resolvable:$true] %s28
      %31 = dma.hbm_to_vmem [thread:$0]  %s27, 256, %s29, [#allocation6]
    $region9: #{tpu_custom_call.1} parent=1 // pred_fallthru
      _
    // Predicated region
    $region10: #{tpu_custom_call.1} parent=1 // pred_check
      _
    $region11: #{tpu_custom_call.1} parent=1 // pred_check_branch
      %33 = sbr.rel (0) target = $region13
    $region12: #{tpu_custom_call.1} parent=1 // pred_region
      %35 = dma.done [#allocation3], 256
    $region13: #{tpu_custom_call.1} parent=1 // pred_fallthru
      _
    // Predicated region
    $region14: #{tpu_custom_call.1} parent=1 // pred_check
      _
    $region15: #{tpu_custom_call.1} parent=1 // pred_check_branch
      %37 = sbr.rel (0) target = $region17
    $region16: #{tpu_custom_call.1} parent=1 // pred_region
      %39 = dma.done [#allocation6], 256
    $region17: #{tpu_custom_call.1} parent=1 // pred_fallthru
      _
    %v40 = vld [vmem:[#allocation2] sm:$0xff]
    %v41 = vld [vmem:[#allocation2 + $0x8] sm:$0xff]
    %v42 = vld [vmem:[#allocation5] sm:$0xff]
    %v43 = vld [vmem:[#allocation5 + $0x8] sm:$0xff]
    %vm44 = vcmp.eq.f32.partialorder %v42, 1.0
    %vm45 = vcmp.eq.f32.partialorder %v43, 1.0
    %v46 = vsel %vm44, 1, 0
    %v47 = vsel %vm45, 1, 0
    %v48 = vcvt.s32.f32 %v46
    %v49 = vcvt.s32.f32 %v47
    %vm50 = vcmp.lt.f32.partialorder %v42, 1.0
    %vm51 = vcmp.lt.f32.partialorder %v43, 1.0
    %v52 = vsel %vm50, 1, 0
    %v53 = vsel %vm51, 1, 0
    %v54 = vcvt.s32.f32 %v52
    %v55 = vcvt.s32.f32 %v53
    %v56 = vmax.f32 %v40, 1e-06
    %v57 = vmax.f32 %v41, 1e-06
    %v58 = vmin.f32 %v56, 0.999999
    %v59 = vmin.f32 %v57, 0.999999
    %v60 = vsub.f32 1.0, %v58
    %v61 = vsub.f32 1.0, %v59
    %v62 = vsel %vm44, %v58, %v60
    %v63 = vsel %vm45, %v59, %v61
    %v64 = vsel %vm44, %v60, %v58
    %v65 = vsel %vm45, %v61, %v59
    %v66 = vsub.f32 1.0, %v42
    %v67 = vsub.f32 1.0, %v43
    %v68 = vmax.f32 %v66, 0.0
    %v69 = vmax.f32 %v67, 0.0
    %v70 = vmul.f32 %v68, %v68
    %v71 = vmul.f32 %v69, %v69
    %v72 = vmul.f32 %v70, %v70
    %v73 = vmul.f32 %v71, %v71
    %v74 = vsel %vm44, 1.0, %v72
    %v75 = vsel %vm45, 1.0, %v73
    %v76 = vlog2.pop %v62
    %v77 = vmul.f32 %v76, 0.6931472
    %v78 = vlog2.pop %v63
    %v79 = vmul.f32 %v78, 0.6931472
    %v80 = vmul.f32 %v64, %v64
    %v81 = vmul.f32 %v65, %v65
    %v82 = vmul.f32 %v77, %v80
    %v83 = vmul.f32 %v79, %v81
    %v84 = vmul.f32 %v82, %v74
    %v85 = vmul.f32 %v83, %v75
    %v86 = vmul.f32 %v84, %v48
    %v87 = vmul.f32 %v85, %v49
    %v88 = vmul.f32 %v84, %v54
    %v89 = vmul.f32 %v85, %v55
    %v90 = vadd.f32 %v86, %v87
    %91 = vadd.xlane.f32.xlu0 %v90
    %v92 = vpop.xlane.xlu0 %91
    %v93 = vadd.f32 %v88, %v89
    %94 = vadd.xlane.f32.xlu0 %v93
    %v95 = vpop.xlane.xlu0 %94
    %v96 = vadd.f32 %v48, %v49
    %97 = vadd.xlane.f32.xlu0 %v96
    %v98 = vpop.xlane.xlu0 %97
    %v99 = vlaneseq
    %v100 = vand.u32 %v99, 127
    %vm101 = vcmp.eq.s32.totalorder %v100, 0
    %vm102 = vcmp.eq.s32.totalorder %v100, 1
    %vm103 = vcmp.eq.s32.totalorder %v100, 2
    %v104 = vsel %vm103, %v98, 0.0
    %v105 = vsel %vm102, %v95, %v104
    %v106 = vsel %vm101, %v92, %v105
    %p107 = scmp.eq.s32.totalorder 0, 0
    // Predicated region
    $region18: #{tpu_custom_call.1} parent=1 // pred_check
      %p108 = pneg %p107
    $region19: #{tpu_custom_call.1} parent=1 // pred_check_branch
      %110 = sbr.rel (%p108) target = $region21
    $region20: #{tpu_custom_call.1} parent=1 // pred_region
      %111 = vst [vmem:[#allocation7] sm:$0xff] 0.0
    $region21: #{tpu_custom_call.1} parent=1 // pred_fallthru
      _
    %v112 = vld [vmem:[#allocation7] sm:$0xff]
    %v113 = vadd.f32 %v112, %v106
    %114 = vst [vmem:[#allocation7] sm:$0xff] %v113
    // Predicated region
    $region22: #{tpu_custom_call.1} parent=1 // pred_check
      _
    $region23: #{tpu_custom_call.1} parent=1 // pred_check_branch
      %116 = sbr.rel (0) target = $region25
    $region24: #{tpu_custom_call.1} parent=1 // pred_region
      %118 = vsyncadd [#allocation4], 0
      %s120 = sshll.u32 [#allocation7], 4
      %s121 = int_to_ptr.vmem [resolvable:$true] %s120
      %s122 = sshll.u32 %s2, 4
      %s123 = int_to_ptr.hbm [resolvable:$true] %s122
      %125 = dma.vmem_to_hbm [thread:$0]  %s121, 128, %s123, [#allocation4]
    $region25: #{tpu_custom_call.1} parent=1 // pred_fallthru
      _
    // Predicated region
    $region26: #{tpu_custom_call.1} parent=1 // pred_check
      _
    $region27: #{tpu_custom_call.1} parent=1 // pred_check_branch
      %127 = sbr.rel (0) target = $region29
    $region28: #{tpu_custom_call.1} parent=1 // pred_region
      %129 = dma.done [#allocation4], 128
    $region29: #{tpu_custom_call.1} parent=1 // pred_fallthru
      _
    %130 = vsyncpa [#allocation3], 1
    %131 = vsyncpa [#allocation6], 1
    %132 = vsyncpa [#allocation4], 1

</llo_original>
